<compile_context>
chip_gen: v6e
topology: v6e:2x2x1
jax: 0.10.0
libtpu: 0.0.40
codegen_flags: <defaults>
</compile_context>

<pallas_src>
import functools

import jax
import jax.numpy as jnp
from jax.experimental import pallas as pl
from jax.experimental.pallas import tpu as pltpu


def _round_up(v, m):
    return (v + m - 1) // m * m


def _pick_bt(batch, channels, hw):
    """Sublane-aligned batch tile: multiples of 8 dividing B, sized so each grid
    step streams ~1-4 MiB and the grid keeps >= 4 steps when the batch allows
    it. Falls back to the whole batch (single step) for small/odd B."""
    per_b = (channels + 3) * _round_up(hw, 128) * 4      # f32 bytes per batch elem
    budget = 2 << 20                                      # ~2 MiB per step
    cands = [d for d in range(8, batch + 1, 8) if batch % d == 0]
    if not cands:
        return batch
    fitting = [d for d in cands if d * per_b <= budget]
    bt = max(fitting) if fitting else min(cands)
    # Prefer more grid steps (pipeline steady state / megacore) over huge tiles.
    while batch // bt < 4 and any(d < bt for d in cands):
        bt = max(d for d in cands if d < bt)
    return bt


def aux_weight_kernel(x_ref, w1_ref, b1_ref, w2_ref, b2_ref, wd_ref, o_ref,
                      *, inv_hw, num_ch):
    # x_ref: (C, bt, HW) channel-major; o_ref: (3, bt, HW).

    # AdaptiveAvgPool2d(1): per-channel lane reduction on (bt, HW) slabs, so
    # batch stays on the sublane axis throughout (no small transposes). Divide
    # by the true spatial size (handles HW not multiple of 128).
    cols = [jnp.sum(x_ref[c], axis=-1, keepdims=True) for c in range(num_ch)]
    y = jnp.concatenate(cols, axis=-1) * inv_hw           # (bt, C)

    # fc[0:3]: BN-scale-folded 1x1 conv (C -> Cr) + BN shift + ReLU.
    h = jnp.sum(w1_ref[...][None, :, :] * y[:, None, :], axis=-1) + b1_ref[...]
    h = jnp.maximum(h, 0.0)                                # (bt, Cr)

    # fc[3:6]: BN-scale-folded 1x1 conv (Cr -> C) + BN shift + Sigmoid.
    g = jnp.sum(w2_ref[...][None, :, :] * h[:, None, :], axis=-1) + b2_ref[...]
    g = jax.nn.sigmoid(g)                                  # (bt, C)

    # Down-conv with the gate folded into the weight:
    #   out[o, b, s] = sum_c (wd[o, c] * g[b, c]) * x[c, b, s]
    # Output-row outer loop; each x channel slab is used directly; a few
    # partial accumulators break the serial add chain.
    n_acc = min(4, num_ch)
    for o in range(3):
        w_o = wd_ref[o:o + 1, :] * g                       # (bt, C)
        accs = [w_o[:, c:c + 1] * x_ref[c] for c in range(n_acc)]
        for c in range(n_acc, num_ch):
            accs[c % n_acc] = accs[c % n_acc] + w_o[:, c:c + 1] * x_ref[c]
        total = accs[0]
        for a in accs[1:]:
            total = total + a
        o_ref[o] = total.astype(o_ref.dtype)               # (bt, HW)


def aux_weight_layer_forward(x, w1, s1, b1, w2, s2, b2, wd):
    """x: (B, C, H, W) f32; returns (B, 3, H, W) f32."""
    B, C, H, W = x.shape
    HW = H * W
    Cr = w1.shape[0]

    # Fold BN scales into the bias-free 1x1 conv weights (exact, eval-mode BN).
    w1f = (s1[:, None] * w1).astype(jnp.float32)           # (Cr, C)
    w2f = (s2[:, None] * w2).astype(jnp.float32)           # (C, Cr)
    b1r = b1.reshape(1, Cr).astype(jnp.float32)
    b2r = b2.reshape(1, C).astype(jnp.float32)
    wdr = wd.astype(jnp.float32)                           # (3, C)

    # Channel-major streaming layout: (C, B, HW) input, (3, B, HW) output —
    # batch on the sublane axis, so the big streamed tensors carry no 8/C or
    # 8/3 sublane padding in HBM. No spatial pad: last block dim == full HW.
    x2 = jnp.transpose(x.astype(jnp.float32).reshape(B, C, HW), (1, 0, 2))

    bt = _pick_bt(B, C, HW)
    grid = (B // bt,)

    # VMEM budget: double-buffered in/out tiles + weights + headroom. >= 32 MiB
    # lifts v5e's 16 MiB default while staying within every chip's physical
    # VMEM for sanely sized tiles (v7x has only 64 MiB total).
    lane = _round_up(HW, 128)
    sub = _round_up(bt, 8)
    tile_in = C * sub * lane * 4
    tile_out = 3 * sub * lane * 4
    vmem_limit = int(max(32 << 20, 2 * (tile_in + tile_out) + (2 << 20)))

    cost = pl.CostEstimate(
        flops=int(B * HW * C * 7 + 4 * B * C * Cr),
        transcendentals=int(B * C),
        bytes_accessed=int((B * C * HW + 3 * B * HW) * 4),
    )

    kernel = functools.partial(aux_weight_kernel, inv_hw=1.0 / HW, num_ch=C)

    out3 = pl.pallas_call(
        kernel,
        out_shape=jax.ShapeDtypeStruct((3, B, HW), jnp.float32),
        grid_spec=pltpu.PrefetchScalarGridSpec(
            num_scalar_prefetch=0,
            grid=grid,
            in_specs=[
                pl.BlockSpec((C, bt, HW), lambda i: (0, i, 0)),   # x, channel-major
                pl.BlockSpec((Cr, C),     lambda i: (0, 0)),      # w1 * bn1_scale
                pl.BlockSpec((1, Cr),     lambda i: (0, 0)),      # bn1 shift
                pl.BlockSpec((C, Cr),     lambda i: (0, 0)),      # w2 * bn2_scale
                pl.BlockSpec((1, C),      lambda i: (0, 0)),      # bn2 shift
                pl.BlockSpec((3, C),      lambda i: (0, 0)),      # down_conv weight
            ],
            out_specs=pl.BlockSpec((3, bt, HW), lambda i: (0, i, 0)),
        ),
        compiler_params=pltpu.CompilerParams(
            dimension_semantics=("parallel",),
            vmem_limit_bytes=vmem_limit),
        cost_estimate=cost,
    )(x2, w1f, b1r, w2f, b2r, wdr)

    out = jnp.transpose(out3, (1, 0, 2)).reshape(B, 3, H, W)
    return out


def aux_weight_layer_ref(x, w1, s1, b1, w2, s2, b2, wd):
    """Pure-JAX reference for correctness checking."""
    y = jnp.mean(x, axis=(2, 3), keepdims=True)                     # (B,C,1,1)
    h = jnp.einsum('oc,bcij->boij', w1, y)
    h = jnp.maximum(h * s1[None, :, None, None] + b1[None, :, None, None], 0.0)
    g = jnp.einsum('oc,bcij->boij', w2, h)
    g = jax.nn.sigmoid(g * s2[None, :, None, None] + b2[None, :, None, None])
    xg = x * g
    return jnp.einsum('oc,bchw->bohw', wd, xg)


def fold_bn(gamma, beta, running_mean, running_var, eps=1e-5):
    scale = gamma / jnp.sqrt(running_var + eps)
    shift = beta - running_mean * scale
    return scale, shift


if __name__ == "__main__":
    # Small shapes consistent with the module: B=2, C=4, ratio=2, H=W=16.
    B, C, ratio, H, W = 2, 4, 2, 16, 16
    Cr = C * ratio

    key = jax.random.PRNGKey(0)
    ks = jax.random.split(key, 12)

    x = jax.random.normal(ks[0], (B, C, H, W), dtype=jnp.float32)

    # Conv2d(C, C*ratio, 1, bias=False) weight: (Cr, C, 1, 1) -> (Cr, C)
    w1 = 0.3 * jax.random.normal(ks[1], (Cr, C), dtype=jnp.float32)
    # BatchNorm2d(Cr) params (deterministic, eval-mode fold)
    g1 = 1.0 + 0.1 * jax.random.normal(ks[2], (Cr,), dtype=jnp.float32)
    be1 = 0.1 * jax.random.normal(ks[3], (Cr,), dtype=jnp.float32)
    rm1 = 0.1 * jax.random.normal(ks[4], (Cr,), dtype=jnp.float32)
    rv1 = jnp.abs(1.0 + 0.1 * jax.random.normal(ks[5], (Cr,), dtype=jnp.float32))

    # Conv2d(C*ratio, C, 1, bias=False) weight: (C, Cr, 1, 1) -> (C, Cr)
    w2 = 0.3 * jax.random.normal(ks[6], (C, Cr), dtype=jnp.float32)
    # BatchNorm2d(C) params
    g2 = 1.0 + 0.1 * jax.random.normal(ks[7], (C,), dtype=jnp.float32)
    be2 = 0.1 * jax.random.normal(ks[8], (C,), dtype=jnp.float32)
    rm2 = 0.1 * jax.random.normal(ks[9], (C,), dtype=jnp.float32)
    rv2 = jnp.abs(1.0 + 0.1 * jax.random.normal(ks[10], (C,), dtype=jnp.float32))

    # down_conv: Conv2d(C, 3, 1, bias=False) weight: (3, C, 1, 1) -> (3, C)
    wd = 0.3 * jax.random.normal(ks[11], (3, C), dtype=jnp.float32)

    s1, b1 = fold_bn(g1, be1, rm1, rv1)
    s2, b2 = fold_bn(g2, be2, rm2, rv2)

    out = aux_weight_layer_forward(x, w1, s1, b1, w2, s2, b2, wd)
    out = jax.block_until_ready(out)

    ref = aux_weight_layer_ref(x, w1, s1, b1, w2, s2, b2, wd)
    assert out.shape == (B, 3, H, W)
    assert jnp.allclose(out, ref, atol=1e-5, rtol=1e-5), "mismatch vs JAX reference"

    print("KERNEL_OK")
</pallas_src>

<mosaic_0001>
module attributes {stable_mosaic.version = 11 : i64} {
  func.func @aux_weight_kernel(%arg0: i32, %arg1: memref<4x2x256xf32, #tpu.memory_space<vmem>>, %arg2: memref<8x4xf32, #tpu.memory_space<vmem>>, %arg3: memref<1x8xf32, #tpu.memory_space<vmem>>, %arg4: memref<4x8xf32, #tpu.memory_space<vmem>>, %arg5: memref<1x4xf32, #tpu.memory_space<vmem>>, %arg6: memref<3x4xf32, #tpu.memory_space<vmem>>, %arg7: memref<3x2x256xf32, #tpu.memory_space<vmem>>) attributes {dimension_semantics = [#tpu.dimension_semantics<parallel>], iteration_bounds = array<i64: 1>, scalar_prefetch = 0 : i64, scratch_operands = 0 : i64, tpu.core_type = #tpu.core_type<tc>, window_params = [{transform_indices = @transform_0, window_bounds = array<i64: 4, 2, 256>}, {pipeline_mode = #tpu.pipeline_mode<synchronous>, transform_indices = @transform_1, window_bounds = array<i64: 8, 4>}, {pipeline_mode = #tpu.pipeline_mode<synchronous>, transform_indices = @transform_2, window_bounds = array<i64: 1, 8>}, {pipeline_mode = #tpu.pipeline_mode<synchronous>, transform_indices = @transform_3, window_bounds = array<i64: 4, 8>}, {pipeline_mode = #tpu.pipeline_mode<synchronous>, transform_indices = @transform_4, window_bounds = array<i64: 1, 4>}, {pipeline_mode = #tpu.pipeline_mode<synchronous>, transform_indices = @transform_5, window_bounds = array<i64: 3, 4>}, {transform_indices = @transform_6, window_bounds = array<i64: 3, 2, 256>}]} {
    %c0 = arith.constant 0 : index
    %c0_0 = arith.constant 0 : index
    %c0_1 = arith.constant 0 : index
    %0 = vector.load %arg1[%c0, %c0_0, %c0_1] : memref<4x2x256xf32, #tpu.memory_space<vmem>>, vector<1x2x256xf32>
    %1 = vector.shape_cast %0 : vector<1x2x256xf32> to vector<2x256xf32>
    %cst = arith.constant dense<0.000000e+00> : vector<2xf32>
    %2 = vector.multi_reduction <add>, %1, %cst [1] : vector<2x256xf32> to vector<2xf32>
    %3 = vector.shape_cast %2 : vector<2xf32> to vector<2x1xf32>
    %c1 = arith.constant 1 : index
    %c0_2 = arith.constant 0 : index
    %c0_3 = arith.constant 0 : index
    %4 = vector.load %arg1[%c1, %c0_2, %c0_3] : memref<4x2x256xf32, #tpu.memory_space<vmem>>, vector<1x2x256xf32>
    %5 = vector.shape_cast %4 : vector<1x2x256xf32> to vector<2x256xf32>
    %cst_4 = arith.constant dense<0.000000e+00> : vector<2xf32>
    %6 = vector.multi_reduction <add>, %5, %cst_4 [1] : vector<2x256xf32> to vector<2xf32>
    %7 = vector.shape_cast %6 : vector<2xf32> to vector<2x1xf32>
    %c2 = arith.constant 2 : index
    %c0_5 = arith.constant 0 : index
    %c0_6 = arith.constant 0 : index
    %8 = vector.load %arg1[%c2, %c0_5, %c0_6] : memref<4x2x256xf32, #tpu.memory_space<vmem>>, vector<1x2x256xf32>
    %9 = vector.shape_cast %8 : vector<1x2x256xf32> to vector<2x256xf32>
    %cst_7 = arith.constant dense<0.000000e+00> : vector<2xf32>
    %10 = vector.multi_reduction <add>, %9, %cst_7 [1] : vector<2x256xf32> to vector<2xf32>
    %11 = vector.shape_cast %10 : vector<2xf32> to vector<2x1xf32>
    %c3 = arith.constant 3 : index
    %c0_8 = arith.constant 0 : index
    %c0_9 = arith.constant 0 : index
    %12 = vector.load %arg1[%c3, %c0_8, %c0_9] : memref<4x2x256xf32, #tpu.memory_space<vmem>>, vector<1x2x256xf32>
    %13 = vector.shape_cast %12 : vector<1x2x256xf32> to vector<2x256xf32>
    %cst_10 = arith.constant dense<0.000000e+00> : vector<2xf32>
    %14 = vector.multi_reduction <add>, %13, %cst_10 [1] : vector<2x256xf32> to vector<2xf32>
    %15 = vector.shape_cast %14 : vector<2xf32> to vector<2x1xf32>
    %16 = tpu.concatenate %3, %7, %11, %15 in 1 : vector<2x1xf32>, vector<2x1xf32>, vector<2x1xf32>, vector<2x1xf32> -> vector<2x4xf32>
    %cst_11 = arith.constant 3.906250e-03 : f32
    %17 = vector.broadcast %cst_11 : f32 to vector<2x4xf32>
    %18 = arith.mulf %16, %17 : vector<2x4xf32>
    %c0_12 = arith.constant 0 : index
    %c0_13 = arith.constant 0 : index
    %19 = vector.load %arg2[%c0_12, %c0_13] : memref<8x4xf32, #tpu.memory_space<vmem>>, vector<8x4xf32>
    %20 = vector.shape_cast %19 : vector<8x4xf32> to vector<1x8x4xf32>
    %21 = vector.shape_cast %18 : vector<2x4xf32> to vector<2x1x4xf32>
    %22 = vector.broadcast %20 : vector<1x8x4xf32> to vector<2x8x4xf32>
    %23 = vector.broadcast %21 : vector<2x1x4xf32> to vector<2x8x4xf32>
    %24 = arith.mulf %22, %23 : vector<2x8x4xf32>
    %cst_14 = arith.constant dense<0.000000e+00> : vector<2x8xf32>
    %25 = vector.multi_reduction <add>, %24, %cst_14 [2] : vector<2x8x4xf32> to vector<2x8xf32>
    %c0_15 = arith.constant 0 : index
    %c0_16 = arith.constant 0 : index
    %26 = vector.load %arg3[%c0_15, %c0_16] : memref<1x8xf32, #tpu.memory_space<vmem>>, vector<1x8xf32>
    %27 = vector.broadcast %26 : vector<1x8xf32> to vector<2x8xf32>
    %28 = arith.addf %25, %27 : vector<2x8xf32>
    %cst_17 = arith.constant 0.000000e+00 : f32
    %29 = vector.broadcast %cst_17 : f32 to vector<2x8xf32>
    %30 = arith.maximumf %28, %29 : vector<2x8xf32>
    %c0_18 = arith.constant 0 : index
    %c0_19 = arith.constant 0 : index
    %31 = vector.load %arg4[%c0_18, %c0_19] : memref<4x8xf32, #tpu.memory_space<vmem>>, vector<4x8xf32>
    %32 = vector.shape_cast %31 : vector<4x8xf32> to vector<1x4x8xf32>
    %33 = vector.shape_cast %30 : vector<2x8xf32> to vector<2x1x8xf32>
    %34 = vector.broadcast %32 : vector<1x4x8xf32> to vector<2x4x8xf32>
    %35 = vector.broadcast %33 : vector<2x1x8xf32> to vector<2x4x8xf32>
    %36 = arith.mulf %34, %35 : vector<2x4x8xf32>
    %cst_20 = arith.constant dense<0.000000e+00> : vector<2x4xf32>
    %37 = vector.multi_reduction <add>, %36, %cst_20 [2] : vector<2x4x8xf32> to vector<2x4xf32>
    %c0_21 = arith.constant 0 : index
    %c0_22 = arith.constant 0 : index
    %38 = vector.load %arg5[%c0_21, %c0_22] : memref<1x4xf32, #tpu.memory_space<vmem>>, vector<1x4xf32>
    %39 = vector.broadcast %38 : vector<1x4xf32> to vector<2x4xf32>
    %40 = arith.addf %37, %39 : vector<2x4xf32>
    %41 = arith.negf %40 : vector<2x4xf32>
    %42 = math.exp %41 : vector<2x4xf32>
    %cst_23 = arith.constant 1.000000e+00 : f32
    %43 = vector.broadcast %cst_23 : f32 to vector<2x4xf32>
    %44 = arith.addf %43, %42 : vector<2x4xf32>
    %45 = arith.divf %43, %44 : vector<2x4xf32>
    %c0_24 = arith.constant 0 : index
    %c0_25 = arith.constant 0 : index
    %46 = vector.load %arg6[%c0_24, %c0_25] : memref<3x4xf32, #tpu.memory_space<vmem>>, vector<1x4xf32>
    %47 = vector.broadcast %46 : vector<1x4xf32> to vector<2x4xf32>
    %48 = arith.mulf %47, %45 : vector<2x4xf32>
    %49 = vector.extract_strided_slice %48 {offsets = [0, 0], sizes = [2, 1], strides = [1, 1]} : vector<2x4xf32> to vector<2x1xf32>
    %c0_26 = arith.constant 0 : index
    %c0_27 = arith.constant 0 : index
    %c0_28 = arith.constant 0 : index
    %50 = vector.load %arg1[%c0_26, %c0_27, %c0_28] : memref<4x2x256xf32, #tpu.memory_space<vmem>>, vector<1x2x256xf32>
    %51 = vector.shape_cast %50 : vector<1x2x256xf32> to vector<2x256xf32>
    %52 = vector.broadcast %49 : vector<2x1xf32> to vector<2x256xf32>
    %53 = arith.mulf %52, %51 : vector<2x256xf32>
    %54 = vector.extract_strided_slice %48 {offsets = [0, 1], sizes = [2, 1], strides = [1, 1]} : vector<2x4xf32> to vector<2x1xf32>
    %c1_29 = arith.constant 1 : index
    %c0_30 = arith.constant 0 : index
    %c0_31 = arith.constant 0 : index
    %55 = vector.load %arg1[%c1_29, %c0_30, %c0_31] : memref<4x2x256xf32, #tpu.memory_space<vmem>>, vector<1x2x256xf32>
    %56 = vector.shape_cast %55 : vector<1x2x256xf32> to vector<2x256xf32>
    %57 = vector.broadcast %54 : vector<2x1xf32> to vector<2x256xf32>
    %58 = arith.mulf %57, %56 : vector<2x256xf32>
    %59 = vector.extract_strided_slice %48 {offsets = [0, 2], sizes = [2, 1], strides = [1, 1]} : vector<2x4xf32> to vector<2x1xf32>
    %c2_32 = arith.constant 2 : index
    %c0_33 = arith.constant 0 : index
    %c0_34 = arith.constant 0 : index
    %60 = vector.load %arg1[%c2_32, %c0_33, %c0_34] : memref<4x2x256xf32, #tpu.memory_space<vmem>>, vector<1x2x256xf32>
    %61 = vector.shape_cast %60 : vector<1x2x256xf32> to vector<2x256xf32>
    %62 = vector.broadcast %59 : vector<2x1xf32> to vector<2x256xf32>
    %63 = arith.mulf %62, %61 : vector<2x256xf32>
    %64 = vector.extract_strided_slice %48 {offsets = [0, 3], sizes = [2, 1], strides = [1, 1]} : vector<2x4xf32> to vector<2x1xf32>
    %c3_35 = arith.constant 3 : index
    %c0_36 = arith.constant 0 : index
    %c0_37 = arith.constant 0 : index
    %65 = vector.load %arg1[%c3_35, %c0_36, %c0_37] : memref<4x2x256xf32, #tpu.memory_space<vmem>>, vector<1x2x256xf32>
    %66 = vector.shape_cast %65 : vector<1x2x256xf32> to vector<2x256xf32>
    %67 = vector.broadcast %64 : vector<2x1xf32> to vector<2x256xf32>
    %68 = arith.mulf %67, %66 : vector<2x256xf32>
    %69 = arith.addf %53, %58 : vector<2x256xf32>
    %70 = arith.addf %69, %63 : vector<2x256xf32>
    %71 = arith.addf %70, %68 : vector<2x256xf32>
    %c0_38 = arith.constant 0 : index
    %c0_39 = arith.constant 0 : index
    %c0_40 = arith.constant 0 : index
    %72 = vector.load %arg7[%c0_38, %c0_39, %c0_40] : memref<3x2x256xf32, #tpu.memory_space<vmem>>, vector<1x2x256xf32>
    %73 = vector.shape_cast %72 : vector<1x2x256xf32> to vector<2x256xf32>
    %74 = vector.shape_cast %71 : vector<2x256xf32> to vector<1x2x256xf32>
    tpu.vector_store %arg7[%c0_38, %c0_39, %c0_40], %74 {strides = array<i32>} : memref<3x2x256xf32, #tpu.memory_space<vmem>>, vector<1x2x256xf32>,
    %c1_41 = arith.constant 1 : index
    %c0_42 = arith.constant 0 : index
    %75 = vector.load %arg6[%c1_41, %c0_42] : memref<3x4xf32, #tpu.memory_space<vmem>>, vector<1x4xf32>
    %76 = vector.broadcast %75 : vector<1x4xf32> to vector<2x4xf32>
    %77 = arith.mulf %76, %45 : vector<2x4xf32>
    %78 = vector.extract_strided_slice %77 {offsets = [0, 0], sizes = [2, 1], strides = [1, 1]} : vector<2x4xf32> to vector<2x1xf32>
    %c0_43 = arith.constant 0 : index
    %c0_44 = arith.constant 0 : index
    %c0_45 = arith.constant 0 : index
    %79 = vector.load %arg1[%c0_43, %c0_44, %c0_45] : memref<4x2x256xf32, #tpu.memory_space<vmem>>, vector<1x2x256xf32>
    %80 = vector.shape_cast %79 : vector<1x2x256xf32> to vector<2x256xf32>
    %81 = vector.broadcast %78 : vector<2x1xf32> to vector<2x256xf32>
    %82 = arith.mulf %81, %80 : vector<2x256xf32>
    %83 = vector.extract_strided_slice %77 {offsets = [0, 1], sizes = [2, 1], strides = [1, 1]} : vector<2x4xf32> to vector<2x1xf32>
    %c1_46 = arith.constant 1 : index
    %c0_47 = arith.constant 0 : index
    %c0_48 = arith.constant 0 : index
    %84 = vector.load %arg1[%c1_46, %c0_47, %c0_48] : memref<4x2x256xf32, #tpu.memory_space<vmem>>, vector<1x2x256xf32>
    %85 = vector.shape_cast %84 : vector<1x2x256xf32> to vector<2x256xf32>
    %86 = vector.broadcast %83 : vector<2x1xf32> to vector<2x256xf32>
    %87 = arith.mulf %86, %85 : vector<2x256xf32>
    %88 = vector.extract_strided_slice %77 {offsets = [0, 2], sizes = [2, 1], strides = [1, 1]} : vector<2x4xf32> to vector<2x1xf32>
    %c2_49 = arith.constant 2 : index
    %c0_50 = arith.constant 0 : index
    %c0_51 = arith.constant 0 : index
    %89 = vector.load %arg1[%c2_49, %c0_50, %c0_51] : memref<4x2x256xf32, #tpu.memory_space<vmem>>, vector<1x2x256xf32>
    %90 = vector.shape_cast %89 : vector<1x2x256xf32> to vector<2x256xf32>
    %91 = vector.broadcast %88 : vector<2x1xf32> to vector<2x256xf32>
    %92 = arith.mulf %91, %90 : vector<2x256xf32>
    %93 = vector.extract_strided_slice %77 {offsets = [0, 3], sizes = [2, 1], strides = [1, 1]} : vector<2x4xf32> to vector<2x1xf32>
    %c3_52 = arith.constant 3 : index
    %c0_53 = arith.constant 0 : index
    %c0_54 = arith.constant 0 : index
    %94 = vector.load %arg1[%c3_52, %c0_53, %c0_54] : memref<4x2x256xf32, #tpu.memory_space<vmem>>, vector<1x2x256xf32>
    %95 = vector.shape_cast %94 : vector<1x2x256xf32> to vector<2x256xf32>
    %96 = vector.broadcast %93 : vector<2x1xf32> to vector<2x256xf32>
    %97 = arith.mulf %96, %95 : vector<2x256xf32>
    %98 = arith.addf %82, %87 : vector<2x256xf32>
    %99 = arith.addf %98, %92 : vector<2x256xf32>
    %100 = arith.addf %99, %97 : vector<2x256xf32>
    %c1_55 = arith.constant 1 : index
    %c0_56 = arith.constant 0 : index
    %c0_57 = arith.constant 0 : index
    %101 = vector.load %arg7[%c1_55, %c0_56, %c0_57] : memref<3x2x256xf32, #tpu.memory_space<vmem>>, vector<1x2x256xf32>
    %102 = vector.shape_cast %101 : vector<1x2x256xf32> to vector<2x256xf32>
    %103 = vector.shape_cast %100 : vector<2x256xf32> to vector<1x2x256xf32>
    tpu.vector_store %arg7[%c1_55, %c0_56, %c0_57], %103 {strides = array<i32>} : memref<3x2x256xf32, #tpu.memory_space<vmem>>, vector<1x2x256xf32>,
    %c2_58 = arith.constant 2 : index
    %c0_59 = arith.constant 0 : index
    %104 = vector.load %arg6[%c2_58, %c0_59] : memref<3x4xf32, #tpu.memory_space<vmem>>, vector<1x4xf32>
    %105 = vector.broadcast %104 : vector<1x4xf32> to vector<2x4xf32>
    %106 = arith.mulf %105, %45 : vector<2x4xf32>
    %107 = vector.extract_strided_slice %106 {offsets = [0, 0], sizes = [2, 1], strides = [1, 1]} : vector<2x4xf32> to vector<2x1xf32>
    %c0_60 = arith.constant 0 : index
    %c0_61 = arith.constant 0 : index
    %c0_62 = arith.constant 0 : index
    %108 = vector.load %arg1[%c0_60, %c0_61, %c0_62] : memref<4x2x256xf32, #tpu.memory_space<vmem>>, vector<1x2x256xf32>
    %109 = vector.shape_cast %108 : vector<1x2x256xf32> to vector<2x256xf32>
    %110 = vector.broadcast %107 : vector<2x1xf32> to vector<2x256xf32>
    %111 = arith.mulf %110, %109 : vector<2x256xf32>
    %112 = vector.extract_strided_slice %106 {offsets = [0, 1], sizes = [2, 1], strides = [1, 1]} : vector<2x4xf32> to vector<2x1xf32>
    %c1_63 = arith.constant 1 : index
    %c0_64 = arith.constant 0 : index
    %c0_65 = arith.constant 0 : index
    %113 = vector.load %arg1[%c1_63, %c0_64, %c0_65] : memref<4x2x256xf32, #tpu.memory_space<vmem>>, vector<1x2x256xf32>
    %114 = vector.shape_cast %113 : vector<1x2x256xf32> to vector<2x256xf32>
    %115 = vector.broadcast %112 : vector<2x1xf32> to vector<2x256xf32>
    %116 = arith.mulf %115, %114 : vector<2x256xf32>
    %117 = vector.extract_strided_slice %106 {offsets = [0, 2], sizes = [2, 1], strides = [1, 1]} : vector<2x4xf32> to vector<2x1xf32>
    %c2_66 = arith.constant 2 : index
    %c0_67 = arith.constant 0 : index
    %c0_68 = arith.constant 0 : index
    %118 = vector.load %arg1[%c2_66, %c0_67, %c0_68] : memref<4x2x256xf32, #tpu.memory_space<vmem>>, vector<1x2x256xf32>
    %119 = vector.shape_cast %118 : vector<1x2x256xf32> to vector<2x256xf32>
    %120 = vector.broadcast %117 : vector<2x1xf32> to vector<2x256xf32>
    %121 = arith.mulf %120, %119 : vector<2x256xf32>
    %122 = vector.extract_strided_slice %106 {offsets = [0, 3], sizes = [2, 1], strides = [1, 1]} : vector<2x4xf32> to vector<2x1xf32>
    %c3_69 = arith.constant 3 : index
    %c0_70 = arith.constant 0 : index
    %c0_71 = arith.constant 0 : index
    %123 = vector.load %arg1[%c3_69, %c0_70, %c0_71] : memref<4x2x256xf32, #tpu.memory_space<vmem>>, vector<1x2x256xf32>
    %124 = vector.shape_cast %123 : vector<1x2x256xf32> to vector<2x256xf32>
    %125 = vector.broadcast %122 : vector<2x1xf32> to vector<2x256xf32>
    %126 = arith.mulf %125, %124 : vector<2x256xf32>
    %127 = arith.addf %111, %116 : vector<2x256xf32>
    %128 = arith.addf %127, %121 : vector<2x256xf32>
    %129 = arith.addf %128, %126 : vector<2x256xf32>
    %c2_72 = arith.constant 2 : index
    %c0_73 = arith.constant 0 : index
    %c0_74 = arith.constant 0 : index
    %130 = vector.load %arg7[%c2_72, %c0_73, %c0_74] : memref<3x2x256xf32, #tpu.memory_space<vmem>>, vector<1x2x256xf32>
    %131 = vector.shape_cast %130 : vector<1x2x256xf32> to vector<2x256xf32>
    %132 = vector.shape_cast %129 : vector<2x256xf32> to vector<1x2x256xf32>
    tpu.vector_store %arg7[%c2_72, %c0_73, %c0_74], %132 {strides = array<i32>} : memref<3x2x256xf32, #tpu.memory_space<vmem>>, vector<1x2x256xf32>,
    return
  }
  func.func @transform_0(%arg0: i32) -> (i32, i32, i32) {
    %c0_i32 = arith.constant 0 : i32
    %c0_i32_0 = arith.constant 0 : i32
    %c0_i32_1 = arith.constant 0 : i32
    return %c0_i32, %arg0, %c0_i32_0 : i32, i32, i32
  }
  func.func @transform_1(%arg0: i32) -> (i32, i32) {
    %c0_i32 = arith.constant 0 : i32
    %c0_i32_0 = arith.constant 0 : i32
    %c0_i32_1 = arith.constant 0 : i32
    return %c0_i32, %c0_i32_0 : i32, i32
  }
  func.func @transform_2(%arg0: i32) -> (i32, i32) {
    %c0_i32 = arith.constant 0 : i32
    %c0_i32_0 = arith.constant 0 : i32
    %c0_i32_1 = arith.constant 0 : i32
    return %c0_i32, %c0_i32_0 : i32, i32
  }
  func.func @transform_3(%arg0: i32) -> (i32, i32) {
    %c0_i32 = arith.constant 0 : i32
    %c0_i32_0 = arith.constant 0 : i32
    %c0_i32_1 = arith.constant 0 : i32
    return %c0_i32, %c0_i32_0 : i32, i32
  }
  func.func @transform_4(%arg0: i32) -> (i32, i32) {
    %c0_i32 = arith.constant 0 : i32
    %c0_i32_0 = arith.constant 0 : i32
    %c0_i32_1 = arith.constant 0 : i32
    return %c0_i32, %c0_i32_0 : i32, i32
  }
  func.func @transform_5(%arg0: i32) -> (i32, i32) {
    %c0_i32 = arith.constant 0 : i32
    %c0_i32_0 = arith.constant 0 : i32
    %c0_i32_1 = arith.constant 0 : i32
    return %c0_i32, %c0_i32_0 : i32, i32
  }
  func.func @transform_6(%arg0: i32) -> (i32, i32, i32) {
    %c0_i32 = arith.constant 0 : i32
    %c0_i32_0 = arith.constant 0 : i32
    %c0_i32_1 = arith.constant 0 : i32
    return %c0_i32, %arg0, %c0_i32_0 : i32, i32, i32
  }
}

</mosaic_0001>

<llo_original>
// kernel: tpu_custom_call.1
$region0: #{tpu_custom_call.1}
  #allocation0 [shape = 'u32[]', space=smem, size = 0x4, offset = 0x4, fixed_abs, tag = 'smem constant byte address 0x4 - core index']
  #allocation1 [shape = 'u32[144,128]{1,0:T(1,128)}', space=vmem, size = 0x12000, scoped, tag = 'internal scratch']
  %s0 = inlined_call_operand.hbm [shape: f32[4,2,256], index: 0, kind: input, shape index: {}]
  %s1 = inlined_call_operand.vmem [shape: f32[8,4], index: 1, kind: input, shape index: {}]
  %s2 = inlined_call_operand.vmem [shape: f32[1,8], index: 2, kind: input, shape index: {}]
  %s3 = inlined_call_operand.vmem [shape: f32[4,8], index: 3, kind: input, shape index: {}]
  %s4 = inlined_call_operand.vmem [shape: f32[1,4], index: 4, kind: input, shape index: {}]
  %s5 = inlined_call_operand.vmem [shape: f32[3,4], index: 5, kind: input, shape index: {}]
  %s6 = inlined_call_operand.hbm [shape: f32[3,2,256], index: 6, kind: output, shape index: {}]
  %s7 = sld [smem:[#allocation0]]
  $region38: #{tpu_custom_call.1} parent=0
    _
  %s9 = ssub.s32 1, %s7
  %s10 = scalar_select 0, %s9, %s7
  $region1: #{tpu_custom_call.1} parent=0
    #allocation2 [shape = 'u8[8192]{0}', space=vmem, size = 0x2000, scoped, tag = 'input window, operand 0, single buffered']
    #allocation3 [shape = 's32[1]{0}', space=sflag, size = 0x4, scoped, tag = 'scoped memory for tpu_custom_call.1']
    #allocation4 [shape = 's32[1]{0}', space=sflag, size = 0x4, scoped, tag = 'scoped memory for tpu_custom_call.1']
    #allocation5 [shape = 'u8[6144]{0}', space=vmem, size = 0x1800, scoped, tag = 'output window, operand 0, single buffered']
    %11 = vsyncpa [#allocation3], 0
    %12 = vsyncpa [#allocation4], 0
    // Predicated region
    $region2: #{tpu_custom_call.1} parent=1 // pred_check
      _
    $region3: #{tpu_custom_call.1} parent=1 // pred_check_branch
      %14 = sbr.rel (0) target = $region5
    $region4: #{tpu_custom_call.1} parent=1 // pred_region
      %s16 = ssub.s32 256, 256
      %17 = vsyncadd [#allocation3], %s16
      %s18 = sshll.u32 [#allocation2], 4
      %s19 = int_to_ptr.vmem [resolvable:$true] %s18
      %24 = dma.hbm_to_vmem [thread:$0]  %s0, 256, %s19, [#allocation3], 64, 64, 4
    $region5: #{tpu_custom_call.1} parent=1 // pred_fallthru
      _
    // Predicated region
    $region6: #{tpu_custom_call.1} parent=1 // pred_check
      _
    $region7: #{tpu_custom_call.1} parent=1 // pred_check_branch
      %26 = sbr.rel (0) target = $region9
    $region8: #{tpu_custom_call.1} parent=1 // pred_region
      _
    $region9: #{tpu_custom_call.1} parent=1 // pred_fallthru
      _
    // Predicated region
    $region10: #{tpu_custom_call.1} parent=1 // pred_check
      _
    $region11: #{tpu_custom_call.1} parent=1 // pred_check_branch
      %28 = sbr.rel (0) target = $region13
    $region12: #{tpu_custom_call.1} parent=1 // pred_region
      _
    $region13: #{tpu_custom_call.1} parent=1 // pred_fallthru
      _
    // Predicated region
    $region14: #{tpu_custom_call.1} parent=1 // pred_check
      _
    $region15: #{tpu_custom_call.1} parent=1 // pred_check_branch
      %30 = sbr.rel (0) target = $region17
    $region16: #{tpu_custom_call.1} parent=1 // pred_region
      _
    $region17: #{tpu_custom_call.1} parent=1 // pred_fallthru
      _
    // Predicated region
    $region18: #{tpu_custom_call.1} parent=1 // pred_check
      _
    $region19: #{tpu_custom_call.1} parent=1 // pred_check_branch
      %32 = sbr.rel (0) target = $region21
    $region20: #{tpu_custom_call.1} parent=1 // pred_region
      _
    $region21: #{tpu_custom_call.1} parent=1 // pred_fallthru
      _
    // Predicated region
    $region22: #{tpu_custom_call.1} parent=1 // pred_check
      _
    $region23: #{tpu_custom_call.1} parent=1 // pred_check_branch
      %34 = sbr.rel (0) target = $region25
    $region24: #{tpu_custom_call.1} parent=1 // pred_region
      _
    $region25: #{tpu_custom_call.1} parent=1 // pred_fallthru
      _
    // Predicated region
    $region26: #{tpu_custom_call.1} parent=1 // pred_check
      _
    $region27: #{tpu_custom_call.1} parent=1 // pred_check_branch
      %36 = sbr.rel (0) target = $region29
    $region28: #{tpu_custom_call.1} parent=1 // pred_region
      %37 = dma.done [#allocation3], 256
    $region29: #{tpu_custom_call.1} parent=1 // pred_fallthru
      _
    %v38 = vld [vmem:[#allocation2] sm:$0xf]
    %v41 = vunpack.c.l.s4 1983009808
    %v42 = vunpack.c.0.s8 %v41
    %v43 = vlaneseq
    %v44 = vshrl.u32 %v43, 7
    %v45 = vsub.s32 %v42, %v44
    %v46 = vrot.slane %v38, %v45
    %v47 = vcombine.high %v46, %v46
    %vm50 = vcmask 1041408
    %v51 = vsel %vm50, %v46, 0.0
    %v52 = vsel %vm50, %v47, 0.0
    %v53 = vadd.f32 %v51, %v52
    %54 = vadd.xlane.f32.xlu0 %v53
    %v55 = vpop.xlane.xlu0 %54
    %s56 = scalar_lea.vmem [#allocation2], 4
    %v57 = vld [vmem:[%s56] sm:$0xf]
    %v60 = vunpack.c.l.s4 1983009808
    %v61 = vunpack.c.0.s8 %v60
    %v62 = vlaneseq
    %v63 = vshrl.u32 %v62, 7
    %v64 = vsub.s32 %v61, %v63
    %v65 = vrot.slane %v57, %v64
    %v66 = vcombine.high %v65, %v65
    %v69 = vsel %vm50, %v65, 0.0
    %v70 = vsel %vm50, %v66, 0.0
    %v71 = vadd.f32 %v69, %v70
    %72 = vadd.xlane.f32.xlu0 %v71
    %v73 = vpop.xlane.xlu0 %72
    %s74 = scalar_lea.vmem [#allocation2], 8
    %v75 = vld [vmem:[%s74] sm:$0xf]
    %v78 = vunpack.c.l.s4 1983009808
    %v79 = vunpack.c.0.s8 %v78
    %v80 = vlaneseq
    %v81 = vshrl.u32 %v80, 7
    %v82 = vsub.s32 %v79, %v81
    %v83 = vrot.slane %v75, %v82
    %v84 = vcombine.high %v83, %v83
    %v87 = vsel %vm50, %v83, 0.0
    %v88 = vsel %vm50, %v84, 0.0
    %v89 = vadd.f32 %v87, %v88
    %90 = vadd.xlane.f32.xlu0 %v89
    %v91 = vpop.xlane.xlu0 %90
    %s92 = scalar_lea.vmem [#allocation2], 12
    %v93 = vld [vmem:[%s92] sm:$0xf]
    %v96 = vunpack.c.l.s4 1983009808
    %v97 = vunpack.c.0.s8 %v96
    %v98 = vlaneseq
    %v99 = vshrl.u32 %v98, 7
    %v100 = vsub.s32 %v97, %v99
    %v101 = vrot.slane %v93, %v100
    %v102 = vcombine.high %v101, %v101
    %v105 = vsel %vm50, %v101, 0.0
    %v106 = vsel %vm50, %v102, 0.0
    %v107 = vadd.f32 %v105, %v106
    %108 = vadd.xlane.f32.xlu0 %v107
    %v109 = vpop.xlane.xlu0 %108
    %vm110 = vcmask 7168
    %v111 = vsel %vm110, %v55, %v73
    %vm112 = vcmask 15360
    %v113 = vsel %vm112, %v111, %v91
    %vm114 = vcmask 23552
    %v115 = vsel %vm114, %v113, %v109
    %v116 = vmul.f32 %v115, 0.00390625
    %v117 = vld [vmem:[%s1] sm:$0xff]
    %v120 = vunpack.c.l.s4 1966171168
    %v121 = vunpack.c.0.s8 %v120
    %v122 = vlaneseq
    %v123 = vshrl.u32 %v122, 7
    %v124 = vsub.s32 %v121, %v123
    %v125 = vrot.slane %v116, %v124
    %v126 = vcombine.high %v125, %v125
    %v128 = vunpack.c.l.s4 1966171168
    %v129 = vunpack.c.0.s8 %v128
    %v130 = vlaneseq
    %v131 = vshrl.u32 %v130, 7
    %v132 = vsub.s32 %v129, %v131
    %v133 = vrot.slane %v125, %v132
    %v135 = vunpack.c.l.s4 1966171168
    %v136 = vunpack.c.0.s8 %v135
    %v137 = vlaneseq
    %v138 = vshrl.u32 %v137, 7
    %v139 = vsub.s32 %v136, %v138
    %v140 = vrot.slane %v126, %v139
    %v141 = vlaneseq
    %v142 = vshrl.u32 %v141, 7
    %v143 = vsub.s32 0, %v142
    %v144 = vrot.slane %v133, %v143
    %v145 = vlaneseq
    %v146 = vshrl.u32 %v145, 7
    %v147 = vsub.s32 0, %v146
    %v148 = vrot.slane %v140, %v147
    %v151 = vmul.f32 %v117, %v144
    %v152 = vmul.f32 %v117, %v148
    %vm153 = vcmask 31744
    %v154 = vsel %vm153, %v151, 0.0
    %155 = vadd.xlane.f32.xlu0 %v154
    %v156 = vpop.xlane.xlu0 %155
    %v157 = vsel %vm153, %v152, 0.0
    %158 = vadd.xlane.f32.xlu0 %v157
    %v159 = vpop.xlane.xlu0 %158
    %v160 = vld [vmem:[%s2] sm:$0x1]
    %v162 = vlaneseq
    %v163 = vshrl.u32 %v162, 7
    %v164 = vsub.s32 0, %v163
    %v165 = vrot.slane %v160, %v164
    %167 = vbcast.lane.b32.xlu0 %v165, 256
    %v168 = vpop.permute.xlu0 %167
    %v170 = vadd.f32 %v156, %v168
    %v171 = vadd.f32 %v159, %v168
    %v172 = vmax.f32 %v170, 0.0
    %v173 = vmax.f32 %v171, 0.0
    %v174 = vld [vmem:[%s3] sm:$0xf]
    %177 = vset.pattern.permute.xlu0 0
    %178 = vperm.xlu0 %177, %v172
    %v179 = vpop.permute.xlu0 %178
    %180 = vset.pattern.permute.xlu0 0
    %181 = vperm.xlu0 %180, %v173
    %v182 = vpop.permute.xlu0 %181
    %v183 = vlaneseq
    %v184 = vand.u32 %v183, 127
    %v185 = vlaneseq
    %v186 = vshrl.u32 %v185, 7
    %v187 = vsub.s32 %v184, %v186
    %v188 = vrot.slane %v179, %v187
    %v189 = vlaneseq
    %v190 = vshrl.u32 %v189, 7
    %v191 = vsub.s32 %v184, %v190
    %v192 = vrot.slane %v182, %v191
    %vm193 = vcmask 1041409
    %vm194 = vcmask 1042434
    %v195 = vsel %vm194, %v188, %v188
    %vm196 = vcmask 1043459
    %v197 = vsel %vm196, %v188, %v195
    %v198 = vsel %vm194, %v192, %v192
    %v199 = vsel %vm196, %v192, %v198
    %v202 = vmul.f32 %v174, %v197
    %v203 = vmul.f32 %v174, %v199
    %vm204 = vcmask 60416
    %v205 = vsel %vm204, %v202, 0.0
    %206 = vadd.xlane.f32.xlu0 %v205
    %v207 = vpop.xlane.xlu0 %206
    %v208 = vsel %vm204, %v203, 0.0
    %209 = vadd.xlane.f32.xlu0 %v208
    %v210 = vpop.xlane.xlu0 %209
    %v211 = vld [vmem:[%s4] sm:$0x1]
    %v213 = vlaneseq
    %v214 = vshrl.u32 %v213, 7
    %v215 = vsub.s32 0, %v214
    %v216 = vrot.slane %v211, %v215
    %218 = vbcast.lane.b32.xlu0 %v216, 256
    %v219 = vpop.permute.xlu0 %218
    %v221 = vadd.f32 %v207, %v219
    %v222 = vadd.f32 %v210, %v219
    %v223 = vxor.u32 %v221, 2147483648
    %v224 = vxor.u32 %v222, 2147483648
    %v225 = vmul.f32 %v223, 1.442695
    %v226 = vpow.pop %v225
    %v227 = vmul.f32 %v224, 1.442695
    %v228 = vpow.pop %v227
    %v229 = vadd.f32 %v226, 1.0
    %v230 = vadd.f32 %v228, 1.0
    %v231 = vrcp.pop %v229
    %v232 = vmul.f32 1.0, %v231
    %v233 = vrcp.pop %v230
    %v234 = vmul.f32 1.0, %v233
    %v235 = vld [vmem:[%s5] sm:$0x1]
    %v236 = vlaneseq
    %v237 = vshrl.u32 %v236, 7
    %v238 = vsub.s32 0, %v237
    %v239 = vrot.slane %v235, %v238
    %242 = vset.pattern.permute.xlu0 0
    %243 = vperm.xlu0 %242, %v232
    %v244 = vpop.permute.xlu0 %243
    %245 = vset.pattern.permute.xlu0 0
    %246 = vperm.xlu0 %245, %v234
    %v247 = vpop.permute.xlu0 %246
    %v248 = vlaneseq
    %v249 = vshrl.u32 %v248, 7
    %v250 = vsub.s32 %v184, %v249
    %v251 = vrot.slane %v244, %v250
    %v252 = vlaneseq
    %v253 = vshrl.u32 %v252, 7
    %v254 = vsub.s32 %v184, %v253
    %v255 = vrot.slane %v247, %v254
    %v256 = vsel %vm193, %v255, %v251
    %v258 = vmul.f32 %v239, %v256
    %260 = vset.pattern.permute.xlu0 0
    %261 = vperm.xlu0 %260, %v258
    %v262 = vpop.permute.xlu0 %261
    %v264 = vmul.f32 %v262, %v46
    %v265 = vmul.f32 %v262, %v47
    %266 = vset.pattern.permute.xlu0 1
    %267 = vperm.xlu0 %266, %v258
    %v268 = vpop.permute.xlu0 %267
    %v270 = vmul.f32 %v268, %v65
    %v271 = vmul.f32 %v268, %v66
    %272 = vset.pattern.permute.xlu0 2
    %273 = vperm.xlu0 %272, %v258
    %v274 = vpop.permute.xlu0 %273
    %v276 = vmul.f32 %v274, %v83
    %v277 = vmul.f32 %v274, %v84
    %278 = vset.pattern.permute.xlu0 3
    %279 = vperm.xlu0 %278, %v258
    %v280 = vpop.permute.xlu0 %279
    %v282 = vmul.f32 %v280, %v101
    %v283 = vmul.f32 %v280, %v102
    %v284 = vadd.f32 %v264, %v270
    %v285 = vadd.f32 %v265, %v271
    %v286 = vadd.f32 %v284, %v276
    %v287 = vadd.f32 %v285, %v277
    %v288 = vadd.f32 %v286, %v282
    %v289 = vadd.f32 %v287, %v283
    %v292 = vcombine.low %v288, %v289
    %v294 = vunpack.c.l.s4 1983009808
    %v295 = vunpack.c.0.s8 %v294
    %v296 = vlaneseq
    %v297 = vshrl.u32 %v296, 7
    %v298 = vsub.s32 %v295, %v297
    %v299 = vrot.slane %v292, %v298
    %301 = vst [vmem:[#allocation5] sm:$0xf] %v299
    %v302 = vld [vmem:[%s5 + $0x1] sm:$0x1]
    %v303 = vlaneseq
    %v304 = vshrl.u32 %v303, 7
    %v305 = vsub.s32 0, %v304
    %v306 = vrot.slane %v302, %v305
    %v307 = vmul.f32 %v306, %v256
    %v308 = vld [vmem:[#allocation2] sm:$0xf]
    %310 = vset.pattern.permute.xlu0 0
    %311 = vperm.xlu0 %310, %v307
    %v312 = vpop.permute.xlu0 %311
    %v316 = vunpack.c.l.s4 1983009808
    %v317 = vunpack.c.0.s8 %v316
    %v318 = vlaneseq
    %v319 = vshrl.u32 %v318, 7
    %v320 = vsub.s32 %v317, %v319
    %v321 = vrot.slane %v308, %v320
    %v322 = vcombine.high %v321, %v321
    %v325 = vmul.f32 %v312, %v321
    %v326 = vmul.f32 %v312, %v322
    %v327 = vld [vmem:[%s56] sm:$0xf]
    %328 = vset.pattern.permute.xlu0 1
    %329 = vperm.xlu0 %328, %v307
    %v330 = vpop.permute.xlu0 %329
    %v334 = vunpack.c.l.s4 1983009808
    %v335 = vunpack.c.0.s8 %v334
    %v336 = vlaneseq
    %v337 = vshrl.u32 %v336, 7
    %v338 = vsub.s32 %v335, %v337
    %v339 = vrot.slane %v327, %v338
    %v340 = vcombine.high %v339, %v339
    %v343 = vmul.f32 %v330, %v339
    %v344 = vmul.f32 %v330, %v340
    %v345 = vld [vmem:[%s74] sm:$0xf]
    %346 = vset.pattern.permute.xlu0 2
    %347 = vperm.xlu0 %346, %v307
    %v348 = vpop.permute.xlu0 %347
    %v352 = vunpack.c.l.s4 1983009808
    %v353 = vunpack.c.0.s8 %v352
    %v354 = vlaneseq
    %v355 = vshrl.u32 %v354, 7
    %v356 = vsub.s32 %v353, %v355
    %v357 = vrot.slane %v345, %v356
    %v358 = vcombine.high %v357, %v357
    %v361 = vmul.f32 %v348, %v357
    %v362 = vmul.f32 %v348, %v358
    %v363 = vld [vmem:[%s92] sm:$0xf]
    %364 = vset.pattern.permute.xlu0 3
    %365 = vperm.xlu0 %364, %v307
    %v366 = vpop.permute.xlu0 %365
    %v370 = vunpack.c.l.s4 1983009808
    %v371 = vunpack.c.0.s8 %v370
    %v372 = vlaneseq
    %v373 = vshrl.u32 %v372, 7
    %v374 = vsub.s32 %v371, %v373
    %v375 = vrot.slane %v363, %v374
    %v376 = vcombine.high %v375, %v375
    %v379 = vmul.f32 %v366, %v375
    %v380 = vmul.f32 %v366, %v376
    %v381 = vadd.f32 %v325, %v343
    %v382 = vadd.f32 %v326, %v344
    %v383 = vadd.f32 %v381, %v361
    %v384 = vadd.f32 %v382, %v362
    %v385 = vadd.f32 %v383, %v379
    %v386 = vadd.f32 %v384, %v380
    %v389 = vcombine.low %v385, %v386
    %v391 = vunpack.c.l.s4 1983009808
    %v392 = vunpack.c.0.s8 %v391
    %v393 = vlaneseq
    %v394 = vshrl.u32 %v393, 7
    %v395 = vsub.s32 %v392, %v394
    %v396 = vrot.slane %v389, %v395
    %s398 = scalar_lea.vmem [#allocation5], 4
    %399 = vst [vmem:[%s398] sm:$0xf] %v396
    %v400 = vld [vmem:[%s5 + $0x2] sm:$0x1]
    %v401 = vlaneseq
    %v402 = vshrl.u32 %v401, 7
    %v403 = vsub.s32 0, %v402
    %v404 = vrot.slane %v400, %v403
    %v405 = vmul.f32 %v404, %v256
    %v406 = vld [vmem:[#allocation2] sm:$0xf]
    %408 = vset.pattern.permute.xlu0 0
    %409 = vperm.xlu0 %408, %v405
    %v410 = vpop.permute.xlu0 %409
    %v414 = vunpack.c.l.s4 1983009808
    %v415 = vunpack.c.0.s8 %v414
    %v416 = vlaneseq
    %v417 = vshrl.u32 %v416, 7
    %v418 = vsub.s32 %v415, %v417
    %v419 = vrot.slane %v406, %v418
    %v420 = vcombine.high %v419, %v419
    %v423 = vmul.f32 %v410, %v419
    %v424 = vmul.f32 %v410, %v420
    %v425 = vld [vmem:[%s56] sm:$0xf]
    %426 = vset.pattern.permute.xlu0 1
    %427 = vperm.xlu0 %426, %v405
    %v428 = vpop.permute.xlu0 %427
    %v432 = vunpack.c.l.s4 1983009808
    %v433 = vunpack.c.0.s8 %v432
    %v434 = vlaneseq
    %v435 = vshrl.u32 %v434, 7
    %v436 = vsub.s32 %v433, %v435
    %v437 = vrot.slane %v425, %v436
    %v438 = vcombine.high %v437, %v437
    %v441 = vmul.f32 %v428, %v437
    %v442 = vmul.f32 %v428, %v438
    %v443 = vld [vmem:[%s74] sm:$0xf]
    %444 = vset.pattern.permute.xlu0 2
    %445 = vperm.xlu0 %444, %v405
    %v446 = vpop.permute.xlu0 %445
    %v450 = vunpack.c.l.s4 1983009808
    %v451 = vunpack.c.0.s8 %v450
    %v452 = vlaneseq
    %v453 = vshrl.u32 %v452, 7
    %v454 = vsub.s32 %v451, %v453
    %v455 = vrot.slane %v443, %v454
    %v456 = vcombine.high %v455, %v455
    %v459 = vmul.f32 %v446, %v455
    %v460 = vmul.f32 %v446, %v456
    %v461 = vld [vmem:[%s92] sm:$0xf]
    %462 = vset.pattern.permute.xlu0 3
    %463 = vperm.xlu0 %462, %v405
    %v464 = vpop.permute.xlu0 %463
    %v468 = vunpack.c.l.s4 1983009808
    %v469 = vunpack.c.0.s8 %v468
    %v470 = vlaneseq
    %v471 = vshrl.u32 %v470, 7
    %v472 = vsub.s32 %v469, %v471
    %v473 = vrot.slane %v461, %v472
    %v474 = vcombine.high %v473, %v473
    %v477 = vmul.f32 %v464, %v473
    %v478 = vmul.f32 %v464, %v474
    %v479 = vadd.f32 %v423, %v441
    %v480 = vadd.f32 %v424, %v442
    %v481 = vadd.f32 %v479, %v459
    %v482 = vadd.f32 %v480, %v460
    %v483 = vadd.f32 %v481, %v477
    %v484 = vadd.f32 %v482, %v478
    %v487 = vcombine.low %v483, %v484
    %v489 = vunpack.c.l.s4 1983009808
    %v490 = vunpack.c.0.s8 %v489
    %v491 = vlaneseq
    %v492 = vshrl.u32 %v491, 7
    %v493 = vsub.s32 %v490, %v492
    %v494 = vrot.slane %v487, %v493
    %s496 = scalar_lea.vmem [#allocation5], 8
    %497 = vst [vmem:[%s496] sm:$0xf] %v494
    // Predicated region
    $region30: #{tpu_custom_call.1} parent=1 // pred_check
      _
    $region31: #{tpu_custom_call.1} parent=1 // pred_check_branch
      %499 = sbr.rel (0) target = $region33
    $region32: #{tpu_custom_call.1} parent=1 // pred_region
      %s501 = ssub.s32 192, 192
      %502 = vsyncadd [#allocation4], %s501
      %s503 = sshll.u32 [#allocation5], 4
      %s504 = int_to_ptr.vmem [resolvable:$true] %s503
      %509 = dma.vmem_to_hbm [thread:$0]  %s504, 192, %s6, [#allocation4], 64, 64, 4
    $region33: #{tpu_custom_call.1} parent=1 // pred_fallthru
      _
    // Predicated region
    $region34: #{tpu_custom_call.1} parent=1 // pred_check
      _
    $region35: #{tpu_custom_call.1} parent=1 // pred_check_branch
      %511 = sbr.rel (0) target = $region37
    $region36: #{tpu_custom_call.1} parent=1 // pred_region
      %512 = dma.done [#allocation4], 192
    $region37: #{tpu_custom_call.1} parent=1 // pred_fallthru
      _
    %513 = vsyncpa [#allocation3], 1
    %514 = vsyncpa [#allocation4], 1

</llo_original>
